<compile_context>
chip_gen: v7x
topology: tpu7x:2x2x1
jax: 0.10.0
libtpu: 0.0.40
codegen_flags: <defaults>
</compile_context>

<pallas_src>
import functools

import jax
import jax.numpy as jnp
import numpy as np
from jax.experimental import pallas as pl
from jax.experimental.pallas import tpu as pltpu

EPS = 1e-8  # torch.nn.CosineSimilarity default eps


def _pair_loss_kernel(xpix_ref, a_ref, pb_ref, ipix_ref, colmod_ref, row_ref,
                      o_ref, acc_ref, *, tiles_per_split):
    p = pl.program_id(2)

    @pl.when(p == 0)
    def _init():
        acc_ref[...] = jnp.zeros_like(acc_ref)

    # 2*cos_sim numerator on the MXU (single small-K matmul, K = C):
    #   dots[n, p] = 2 * (patch_n . (W x_p + b)) / max(||patch_n||, eps)
    dots = jnp.dot(a_ref[...], xpix_ref[...],
                   preferred_element_type=jnp.float32) + pb_ref[...]        # (N, TP)

    # exp(sim / 0.5): the per-pixel inverse norm (1, TP) is precomputed and streamed.
    vals = jnp.exp(dots * ipix_ref[...])                                    # (N, TP)

    # Off-diagonal mask: keep (pixel p, patch n) pairs with (p % N) != n.
    # colmod is a streamed precomputed lane vector -> one compare + select, no integer mod.
    keep = colmod_ref[...] != row_ref[...]                                  # (N, TP)
    vals = jnp.where(keep, vals, 0.0)

    # Lane-partial accumulation; the cross-lane reduce happens once, at finalize.
    acc_ref[...] += jnp.sum(vals, axis=0, keepdims=True)                    # (1, TP)

    @pl.when(p == tiles_per_split - 1)
    def _finalize():
        o_ref[...] = jnp.sum(acc_ref[...], keepdims=True)                   # (1, 1)


def _vmem_capacity_bytes():
    try:
        return int(pltpu.get_tpu_info().vmem_capacity_bytes)
    except Exception:
        return 64 * 1024 * 1024  # conservative (v7x-sized) fallback


def _choose_tile_p(P, N, vmem_cap, max_tile_p=None):
    """Largest pixel tile TP (multiple of 128 dividing P) under a chip-dependent VMEM budget."""
    if max_tile_p is None:
        # ~40 MiB working set on 128-MiB-VMEM chips (v5e/v6e), ~14 MiB on v7x (64 MiB VMEM).
        budget = (40 if vmem_cap >= 100 * 1024 * 1024 else 14) * 1024 * 1024
        # Per pixel column: a few live (N, TP) f32 temporaries + double-buffered streams + acc.
        per_col = 16 * N + 256
        max_tile_p = max(128, budget // per_col)
    best = None
    t = 128
    while t <= min(max_tile_p, P):
        if P % t == 0:
            best = t
        t += 128
    if best is None:
        best = P  # tiny or non-128-divisible P: single full-width tile
    return best


def pair_contrastive_loss(x, w_pix, b_pix, w_pat, b_pat, size, *,
                          max_tile_p=None, num_splits=None):
    B, C, H, W = x.shape
    D = w_pix.shape[0]
    s = size
    N = (H // s) * (W // s)
    P = H * W

    xf = x.astype(jnp.float32)
    w2 = w_pix.reshape(D, C).astype(jnp.float32)
    b2 = b_pix.astype(jnp.float32)

    # ---- patch branch entirely in XLA (tiny result: (B, N, D)) ----
    patch = jax.lax.conv_general_dilated(
        xf, w_pat.astype(jnp.float32), window_strides=(s, s), padding="VALID",
        dimension_numbers=("NCHW", "OIHW", "NCHW"))                          # (B, D, H//s, W//s)
    patch = (patch.reshape(B, D, N).transpose(0, 2, 1)
             + b_pat.astype(jnp.float32)[None, None, :])                     # (B, N, D)
    pat_norm = jnp.sqrt(jnp.sum(patch * patch, axis=-1, keepdims=True))      # (B, N, 1)

    # Fold patch-norm reciprocal, /0.5 temperature and the 1x1 pixel conv into the patch side.
    pn2 = patch * (2.0 / jnp.maximum(pat_norm, EPS))                         # (B, N, D)
    a_s = jnp.einsum('bnd,dc->bnc', pn2, w2)                                 # (B, N, C)
    pb_s = jnp.einsum('bnd,d->bn', pn2, b2)[..., None]                       # (B, N, 1)

    # Pixel-norm reciprocal via the Gram form (no D-dim work, tiny (B, P) result).
    xpix = xf.reshape(B, C, P)                                               # plain NCHW reshape
    gram = w2.T @ w2                                                         # (C, C)
    u = w2.T @ b2                                                            # (C,)
    bb = jnp.dot(b2, b2)                                                     # ()
    gx = jnp.einsum('kc,bcp->bkp', gram, xpix)                               # (B, C, P)
    nsq = (jnp.einsum('bcp,bcp->bp', xpix, gx)
           + 2.0 * jnp.einsum('c,bcp->bp', u, xpix) + bb)                    # (B, P) = ||Wx+b||^2
    # NOTE: reference clamps the product of norms; with norms >> eps this split clamp is equal.
    inv_pix = (1.0 / jnp.maximum(jnp.sqrt(jnp.maximum(nsq, 0.0)), EPS)).reshape(B, 1, P)

    # Off-diagonal mask helpers (streamed; removes the in-kernel iota + integer-mod fallback).
    colmod = (jnp.arange(P, dtype=jnp.int32) % N).reshape(1, P)              # p % N per pixel
    rowids = jnp.arange(N, dtype=jnp.int32).reshape(N, 1)

    vmem_cap = _vmem_capacity_bytes()
    TP = _choose_tile_p(P, N, vmem_cap, max_tile_p)
    num_pt = P // TP

    # v7x megacore: leading parallel axis splitting the pixel range in half when possible.
    if num_splits is None:
        num_splits = 2 if (num_pt % 2 == 0 and num_pt >= 2) else 1
    if num_splits < 1 or num_pt % num_splits != 0:
        num_splits = 1
    ppsplit = num_pt // num_splits

    kernel = functools.partial(_pair_loss_kernel, tiles_per_split=ppsplit)

    out = pl.pallas_call(
        kernel,
        out_shape=jax.ShapeDtypeStruct((num_splits * B, 1, 1), jnp.float32),
        grid_spec=pltpu.PrefetchScalarGridSpec(
            num_scalar_prefetch=0,
            grid=(num_splits, B, ppsplit),
            in_specs=[
                pl.BlockSpec((None, C, TP), lambda sp, b, p: (b, 0, sp * ppsplit + p)),
                pl.BlockSpec((None, N, C), lambda sp, b, p: (b, 0, 0)),
                pl.BlockSpec((None, N, 1), lambda sp, b, p: (b, 0, 0)),
                pl.BlockSpec((None, 1, TP), lambda sp, b, p: (b, 0, sp * ppsplit + p)),
                pl.BlockSpec((1, TP), lambda sp, b, p: (0, sp * ppsplit + p)),
                pl.BlockSpec((N, 1), lambda sp, b, p: (0, 0)),
            ],
            out_specs=pl.BlockSpec((None, 1, 1), lambda sp, b, p: (sp * B + b, 0, 0)),
            scratch_shapes=[pltpu.VMEM((1, TP), jnp.float32)],
        ),
        compiler_params=pltpu.CompilerParams(
            dimension_semantics=("parallel", "parallel", "arbitrary"),
            vmem_limit_bytes=(80 if vmem_cap >= 100 * 1024 * 1024 else 40) * 1024 * 1024,
        ),
    )(xpix, a_s, pb_s, inv_pix, colmod, rowids)

    S = jnp.sum(out)        # global off-diagonal exp-sum over batches / pixels / patches
    return jnp.log(S)       # == -log(1/S); torch's .mean() on a scalar is a no-op


def reference_loss(x, w_pix, b_pix, w_pat, b_pat, size):
    # Pure-JAX f32 replica of the PyTorch forward for verification.
    B, C, H, W = x.shape
    D = w_pix.shape[0]
    s = size
    N = (H // s) * (W // s)
    pixel = jnp.einsum('bchw,dc->bdhw', x, w_pix.reshape(D, C)) + b_pix[None, :, None, None]
    xp = x.reshape(B, C, H // s, s, W // s, s).transpose(0, 2, 4, 1, 3, 5).reshape(B, N, C * s * s)
    patch = jnp.einsum('bnk,dk->bnd', xp, w_pat.reshape(D, C * s * s)) + b_pat[None, None, :]
    pixel = pixel.reshape(B, D, H * W).transpose(0, 2, 1)                    # (B, P, D)
    pn = jnp.linalg.norm(pixel, axis=-1, keepdims=True)
    qn = jnp.linalg.norm(patch, axis=-1, keepdims=True)
    dots = jnp.einsum('bpd,bnd->bpn', pixel, patch)
    sim = dots / jnp.maximum(pn * qn.transpose(0, 2, 1), EPS)
    SIM = sim.reshape(B, s * s, N, N)
    eye = jnp.eye(N, dtype=bool)
    far = SIM[:, :, ~eye]
    S = jnp.sum(jnp.exp(far / 0.5))
    return -jnp.log(1.0 / S)


if __name__ == "__main__":
    B, C, H, W = 2, 4, 16, 16
    hidden = 32
    size = 4  # patch size (module default is 16; smaller here for small shapes)

    key = jax.random.PRNGKey(0)
    k1, k2, k3, k4, k5 = jax.random.split(key, 5)
    x = jax.random.normal(k1, (B, C, H, W), dtype=jnp.float32)
    # Deterministic synthetic parameters (same shapes as nn.Conv2d weights/biases).
    w_pix = jax.random.normal(k2, (hidden, C, 1, 1), dtype=jnp.float32) * 0.1
    b_pix = jax.random.normal(k3, (hidden,), dtype=jnp.float32) * 0.1
    w_pat = jax.random.normal(k4, (hidden, C, size, size), dtype=jnp.float32) * 0.1
    b_pat = jax.random.normal(k5, (hidden,), dtype=jnp.float32) * 0.1

    ref = reference_loss(x, w_pix, b_pix, w_pat, b_pat, size)

    # max_tile_p=128 forces 2 pixel tiles at this small shape.  num_splits=2 exercises the
    # megacore split path (grid (2, B, 1)); num_splits=1 exercises the multi-step accumulation
    # path (grid (1, B, 2)); the default call exercises the single-tile path.
    for kwargs in ({"max_tile_p": 128, "num_splits": 2},
                   {"max_tile_p": 128, "num_splits": 1},
                   {}):
        loss = pair_contrastive_loss(x, w_pix, b_pix, w_pat, b_pat, size, **kwargs)
        loss = jax.block_until_ready(loss)
        np.testing.assert_allclose(np.asarray(loss), np.asarray(ref), rtol=5e-3, atol=5e-3)

    print("KERNEL_OK")
</pallas_src>

<mosaic_0001>
module attributes {stable_mosaic.version = 11 : i64} {
  func.func @_pair_loss_kernel(%arg0: i32, %arg1: i32, %arg2: i32, %arg3: memref<1x4x128xf32, #tpu.memory_space<vmem>>, %arg4: memref<1x16x4xf32, #tpu.memory_space<vmem>>, %arg5: memref<1x16x1xf32, #tpu.memory_space<vmem>>, %arg6: memref<1x1x128xf32, #tpu.memory_space<vmem>>, %arg7: memref<1x128xi32, #tpu.memory_space<vmem>>, %arg8: memref<16x1xi32, #tpu.memory_space<vmem>>, %arg9: memref<1x1x1xf32, #tpu.memory_space<vmem>>, %arg10: memref<1x128xf32, #tpu.memory_space<vmem>>) attributes {dimension_semantics = [#tpu.dimension_semantics<parallel>, #tpu.dimension_semantics<parallel>, #tpu.dimension_semantics<arbitrary>], iteration_bounds = array<i64: 2, 2, 1>, scalar_prefetch = 0 : i64, scratch_operands = 1 : i64, tpu.core_type = #tpu.core_type<tc>, window_params = [{transform_indices = @transform_0, window_bounds = array<i64: 1, 4, 128>}, {transform_indices = @transform_1, window_bounds = array<i64: 1, 16, 4>}, {transform_indices = @transform_2, window_bounds = array<i64: 1, 16, 1>}, {transform_indices = @transform_3, window_bounds = array<i64: 1, 1, 128>}, {transform_indices = @transform_4, window_bounds = array<i64: 1, 128>}, {pipeline_mode = #tpu.pipeline_mode<synchronous>, transform_indices = @transform_5, window_bounds = array<i64: 16, 1>}, {transform_indices = @transform_6, window_bounds = array<i64: 1, 1, 1>}]} {
    %c0_i32 = arith.constant 0 : i32
    %0 = arith.cmpi eq, %arg2, %c0_i32 : i32
    %1 = arith.extui %0 : i1 to i32
    %c0_i32_0 = arith.constant 0 : i32
    %2 = arith.cmpi ne, %1, %c0_i32_0 : i32
    scf.if %2 {
      %cst_24 = arith.constant 0.000000e+00 : f32
      %32 = vector.broadcast %cst_24 : f32 to vector<1x128xf32>
      %c0_25 = arith.constant 0 : index
      %c0_26 = arith.constant 0 : index
      %33 = vector.load %arg10[%c0_25, %c0_26] : memref<1x128xf32, #tpu.memory_space<vmem>>, vector<1x128xf32>
      tpu.vector_store %arg10[%c0_25, %c0_26], %32 {strides = array<i32>} : memref<1x128xf32, #tpu.memory_space<vmem>>, vector<1x128xf32>,
    } else {
    }
    %c0 = arith.constant 0 : index
    %c0_1 = arith.constant 0 : index
    %c0_2 = arith.constant 0 : index
    %3 = vector.load %arg4[%c0, %c0_1, %c0_2] : memref<1x16x4xf32, #tpu.memory_space<vmem>>, vector<1x16x4xf32>
    %4 = vector.shape_cast %3 : vector<1x16x4xf32> to vector<16x4xf32>
    %c0_3 = arith.constant 0 : index
    %c0_4 = arith.constant 0 : index
    %c0_5 = arith.constant 0 : index
    %5 = vector.load %arg3[%c0_3, %c0_4, %c0_5] : memref<1x4x128xf32, #tpu.memory_space<vmem>>, vector<1x4x128xf32>
    %6 = vector.shape_cast %5 : vector<1x4x128xf32> to vector<4x128xf32>
    %cst = arith.constant dense<0.000000e+00> : vector<16x128xf32>
    %7 = tpu.matmul %4, %6, %cst {dimension_numbers = #tpu.dot_dimension_numbers<[1], [0], [0], [1], [0, 0, 1, 1], [], []>} : vector<16x4xf32>, vector<4x128xf32>, vector<16x128xf32> -> vector<16x128xf32>
    %c0_6 = arith.constant 0 : index
    %c0_7 = arith.constant 0 : index
    %c0_8 = arith.constant 0 : index
    %8 = vector.load %arg5[%c0_6, %c0_7, %c0_8] : memref<1x16x1xf32, #tpu.memory_space<vmem>>, vector<1x16x1xf32>
    %9 = vector.shape_cast %8 : vector<1x16x1xf32> to vector<16x1xf32>
    %10 = vector.broadcast %9 : vector<16x1xf32> to vector<16x128xf32>
    %11 = arith.addf %7, %10 : vector<16x128xf32>
    %c0_9 = arith.constant 0 : index
    %c0_10 = arith.constant 0 : index
    %c0_11 = arith.constant 0 : index
    %12 = vector.load %arg6[%c0_9, %c0_10, %c0_11] : memref<1x1x128xf32, #tpu.memory_space<vmem>>, vector<1x1x128xf32>
    %13 = vector.shape_cast %12 : vector<1x1x128xf32> to vector<1x128xf32>
    %14 = vector.broadcast %13 : vector<1x128xf32> to vector<16x128xf32>
    %15 = arith.mulf %11, %14 : vector<16x128xf32>
    %16 = math.exp %15 : vector<16x128xf32>
    %c0_12 = arith.constant 0 : index
    %c0_13 = arith.constant 0 : index
    %17 = vector.load %arg7[%c0_12, %c0_13] : memref<1x128xi32, #tpu.memory_space<vmem>>, vector<1x128xi32>
    %c0_14 = arith.constant 0 : index
    %c0_15 = arith.constant 0 : index
    %18 = vector.load %arg8[%c0_14, %c0_15] : memref<16x1xi32, #tpu.memory_space<vmem>>, vector<16x1xi32>
    %19 = vector.broadcast %17 : vector<1x128xi32> to vector<16x128xi32>
    %20 = vector.broadcast %18 : vector<16x1xi32> to vector<16x128xi32>
    %21 = arith.cmpi ne, %19, %20 : vector<16x128xi32>
    %cst_16 = arith.constant 0.000000e+00 : f32
    %22 = vector.broadcast %cst_16 : f32 to vector<16x128xf32>
    %23 = arith.select %21, %16, %22 : vector<16x128xi1>, vector<16x128xf32>
    %c0_17 = arith.constant 0 : index
    %c0_18 = arith.constant 0 : index
    %24 = vector.load %arg10[%c0_17, %c0_18] : memref<1x128xf32, #tpu.memory_space<vmem>>, vector<1x128xf32>
    %cst_19 = arith.constant dense<0.000000e+00> : vector<128xf32>
    %25 = vector.multi_reduction <add>, %23, %cst_19 [0] : vector<16x128xf32> to vector<128xf32>
    %26 = vector.shape_cast %25 : vector<128xf32> to vector<1x128xf32>
    %27 = arith.addf %24, %26 : vector<1x128xf32>
    %c0_20 = arith.constant 0 : index
    %c0_21 = arith.constant 0 : index
    %28 = vector.load %arg10[%c0_20, %c0_21] : memref<1x128xf32, #tpu.memory_space<vmem>>, vector<1x128xf32>
    tpu.vector_store %arg10[%c0_20, %c0_21], %27 {strides = array<i32>} : memref<1x128xf32, #tpu.memory_space<vmem>>, vector<1x128xf32>,
    %c0_i32_22 = arith.constant 0 : i32
    %29 = arith.cmpi eq, %arg2, %c0_i32_22 : i32
    %30 = arith.extui %29 : i1 to i32
    %c0_i32_23 = arith.constant 0 : i32
    %31 = arith.cmpi ne, %30, %c0_i32_23 : i32
    scf.if %31 {
      %c0_24 = arith.constant 0 : index
      %c0_25 = arith.constant 0 : index
      %32 = vector.load %arg10[%c0_24, %c0_25] : memref<1x128xf32, #tpu.memory_space<vmem>>, vector<1x128xf32>
      %33 = vector.shape_cast %32 : vector<1x128xf32> to vector<1x1x128xf32>
      %cst_26 = arith.constant dense<0.000000e+00> : vector<1xf32>
      %34 = vector.multi_reduction <add>, %33, %cst_26 [1, 2] : vector<1x1x128xf32> to vector<1xf32>
      %35 = vector.shape_cast %34 : vector<1xf32> to vector<1x1x1xf32>
      %36 = vector.extract %35[0, 0, 0] : f32 from vector<1x1x1xf32>
      %37 = vector.broadcast %36 : f32 to vector<1x1xf32>
      %c0_27 = arith.constant 0 : index
      %c0_28 = arith.constant 0 : index
      %c0_29 = arith.constant 0 : index
      %38 = vector.load %arg9[%c0_27, %c0_28, %c0_29] : memref<1x1x1xf32, #tpu.memory_space<vmem>>, vector<1x1x1xf32>
      %39 = vector.shape_cast %38 : vector<1x1x1xf32> to vector<1x1xf32>
      %40 = vector.shape_cast %37 : vector<1x1xf32> to vector<1x1x1xf32>
      tpu.vector_store %arg9[%c0_27, %c0_28, %c0_29], %40 {strides = array<i32>} : memref<1x1x1xf32, #tpu.memory_space<vmem>>, vector<1x1x1xf32>,
    } else {
    }
    return
  }
  func.func @transform_0(%arg0: i32, %arg1: i32, %arg2: i32) -> (i32, i32, i32) {
    %c1_i32 = arith.constant 1 : i32
    %0 = arith.muli %arg0, %c1_i32 : i32
    %1 = arith.addi %0, %arg2 : i32
    %c0_i32 = arith.constant 0 : i32
    %c0_i32_0 = arith.constant 0 : i32
    return %arg1, %c0_i32, %1 : i32, i32, i32
  }
  func.func @transform_1(%arg0: i32, %arg1: i32, %arg2: i32) -> (i32, i32, i32) {
    %c0_i32 = arith.constant 0 : i32
    %c0_i32_0 = arith.constant 0 : i32
    %c0_i32_1 = arith.constant 0 : i32
    return %arg1, %c0_i32, %c0_i32_0 : i32, i32, i32
  }
  func.func @transform_2(%arg0: i32, %arg1: i32, %arg2: i32) -> (i32, i32, i32) {
    %c0_i32 = arith.constant 0 : i32
    %c0_i32_0 = arith.constant 0 : i32
    %c0_i32_1 = arith.constant 0 : i32
    return %arg1, %c0_i32, %c0_i32_0 : i32, i32, i32
  }
  func.func @transform_3(%arg0: i32, %arg1: i32, %arg2: i32) -> (i32, i32, i32) {
    %c1_i32 = arith.constant 1 : i32
    %0 = arith.muli %arg0, %c1_i32 : i32
    %1 = arith.addi %0, %arg2 : i32
    %c0_i32 = arith.constant 0 : i32
    %c0_i32_0 = arith.constant 0 : i32
    return %arg1, %c0_i32, %1 : i32, i32, i32
  }
  func.func @transform_4(%arg0: i32, %arg1: i32, %arg2: i32) -> (i32, i32) {
    %c1_i32 = arith.constant 1 : i32
    %0 = arith.muli %arg0, %c1_i32 : i32
    %1 = arith.addi %0, %arg2 : i32
    %c0_i32 = arith.constant 0 : i32
    %c0_i32_0 = arith.constant 0 : i32
    return %c0_i32, %1 : i32, i32
  }
  func.func @transform_5(%arg0: i32, %arg1: i32, %arg2: i32) -> (i32, i32) {
    %c0_i32 = arith.constant 0 : i32
    %c0_i32_0 = arith.constant 0 : i32
    %c0_i32_1 = arith.constant 0 : i32
    return %c0_i32, %c0_i32_0 : i32, i32
  }
  func.func @transform_6(%arg0: i32, %arg1: i32, %arg2: i32) -> (i32, i32, i32) {
    %c2_i32 = arith.constant 2 : i32
    %0 = arith.muli %arg0, %c2_i32 : i32
    %1 = arith.addi %0, %arg1 : i32
    %c0_i32 = arith.constant 0 : i32
    %c0_i32_0 = arith.constant 0 : i32
    %c0_i32_1 = arith.constant 0 : i32
    return %1, %c0_i32, %c0_i32_0 : i32, i32, i32
  }
}

</mosaic_0001>

<llo_original>
// kernel: tpu_custom_call.1
$region0: #{tpu_custom_call.1}
  #allocation0 [shape = 'u32[]', space=smem, size = 0x4, offset = 0x4, fixed_abs, tag = 'smem constant byte address 0x4 - core index']
  #allocation1 [shape = 'u32[144,128]{1,0:T(1,128)}', space=vmem, size = 0x12000, scoped, tag = 'internal scratch']
  #allocation2 [shape = 'f32[1,128]{1,0:T(1,128)}', space=vmem, size = 0x200, scoped, tag = 'scratch operand']
  %s0 = inlined_call_operand.vmem [shape: f32[2,4,256], index: 0, kind: input, shape index: {}]
  %s1 = inlined_call_operand.vmem [shape: f32[2,16,4], index: 1, kind: input, shape index: {}]
  %s2 = inlined_call_operand.vmem [shape: f32[2,16,1], index: 2, kind: input, shape index: {}]
  %s3 = inlined_call_operand.vmem [shape: f32[2,1,256], index: 3, kind: input, shape index: {}]
  %s4 = inlined_call_operand.vmem [shape: s32[1,256], index: 4, kind: input, shape index: {}]
  %s5 = inlined_call_operand.vmem [shape: s32[16,1], index: 5, kind: input, shape index: {}]
  %s6 = inlined_call_operand.vmem [shape: f32[4,1,1], index: 6, kind: output, shape index: {}]
  %s7 = sld [smem:[#allocation0]]
  $region65: #{tpu_custom_call.1} parent=0
    _
  %s9 = ssub.s32 1, %s7
  %s10 = scalar_select 0, %s9, %s7
  loop: start=0, step=1, limit=6
  $region2: #{tpu_custom_call.1} parent=0 // loop_pre_header
    _
  $region3: #{tpu_custom_call.1} parent=0 // loop_header
    %s12 = sphi 0, %s16
    %p13 = scmp.ge.s32.totalorder %s12, 6
    %s19 = sphi 0, %s38
    %s20 = sphi 0, %s34
    %s21 = sphi 0, %s30
    %s22 = sphi 0, %s19
    %s23 = sphi 0, %s20
    %s24 = sphi 0, %s21
    %s25 = sphi 0, %s22
    %s26 = sphi 0, %s23
    %s27 = sphi 0, %s24
    %s45 = sphi 0, %s47
    %s48 = sphi 0, %s45
    %s49 = sphi 0, %s48
    %s65 = sphi 0, %s49
    %s71 = sphi 0, %s73
    %s74 = sphi 0, %s71
    %s75 = sphi 0, %s74
    %s91 = sphi 0, %s75
    %s97 = sphi 0, %s99
    %s100 = sphi 0, %s97
    %s101 = sphi 0, %s100
    %s117 = sphi 0, %s101
    %s127 = sphi 0, %s129
    %s130 = sphi 0, %s127
    %s131 = sphi 0, %s130
    %s147 = sphi 0, %s131
    %s155 = sphi 0, %s157
    %s158 = sphi 0, %s155
    %s159 = sphi 0, %s158
    %s175 = sphi 0, %s159
    %s179 = sphi 0, %s179
    %s181 = sphi 0, %s179
    %s182 = sphi 0, %s181
    %s196 = sphi 0, %s182
    %s206 = sphi 0, %s208
    %s209 = sphi 0, %s206
    %s210 = sphi 0, %s209
    %s226 = sphi 0, %s210
  $region4: #{tpu_custom_call.1} parent=0 // loop_header_branch
    %15 = sbr.rel (%p13) target = $region8
  $region5: #{tpu_custom_call.1} parent=0 // loop_body
    %s17 = ssub.s32 %s12, 1
    %s18 = ssub.s32 %s12, 2
    %s28 = sadd.s32 1, %s21
    %p29 = scmp.ge.s32.totalorder %s28, 1
    %s30 = scalar_select %p29, 0, %s28
    %s31 = sadd.s32 1, %s20
    %s32 = scalar_select %p29, %s31, %s20
    %p33 = scmp.ge.s32.totalorder %s32, 2
    %s34 = scalar_select %p33, 0, %s32
    %s35 = sadd.s32 1, %s19
    %s36 = scalar_select %p33, %s35, %s19
    %p37 = scmp.ge.s32.totalorder %s36, 2
    %s38 = scalar_select %p37, 0, %s36
    %s39 = sadd.s32 %s19, %s21
    %s40 = sadd.s32 %s38, %s30
    %s41 = ssub.s32 %s20, %s34
    %s42 = ssub.s32 %s39, %s40
    %s43 = sor.u32 %s41, %s42
    %p44 = scmp.eq.s32.totalorder %s43, 0
    %s46 = sadd.s32 %s45, 1
    %s47 = scalar_select %p44, %s45, %s46
    %p50 = pneg %p44
    %p51 = scmp.eq.s32.totalorder %s12, 3
    %p52 = por %p50, %p51
    %p53 = scmp.ne.s32.totalorder %s45, %s48
    %p54 = scmp.eq.s32.totalorder %s12, 0
    %p55 = por %p53, %p54
    %p56 = scmp.ne.s32.totalorder %s45, %s48
    %p57 = scmp.eq.s32.totalorder %s17, 3
    %p58 = por %p56, %p57
    %p59 = scmp.ne.s32.totalorder %s48, %s49
    %p60 = scmp.eq.s32.totalorder %s17, 0
    %p61 = por %p59, %p60
    %p62 = scmp.ne.s32.totalorder %s48, %s49
    %p63 = scmp.eq.s32.totalorder %s18, 3
    %p64 = por %p62, %p63
    %p66 = scmp.ne.s32.totalorder %s49, %s65
    %p67 = scmp.eq.s32.totalorder %s18, 0
    %p68 = por %p66, %p67
    %s69 = ssub.s32 %s20, %s34
    %p70 = scmp.eq.s32.totalorder %s69, 0
    %s72 = sadd.s32 %s71, 1
    %s73 = scalar_select %p70, %s71, %s72
    %p76 = pneg %p70
    %p77 = scmp.eq.s32.totalorder %s12, 3
    %p78 = por %p76, %p77
    %p79 = scmp.ne.s32.totalorder %s71, %s74
    %p80 = scmp.eq.s32.totalorder %s12, 0
    %p81 = por %p79, %p80
    %p82 = scmp.ne.s32.totalorder %s71, %s74
    %p83 = scmp.eq.s32.totalorder %s17, 3
    %p84 = por %p82, %p83
    %p85 = scmp.ne.s32.totalorder %s74, %s75
    %p86 = scmp.eq.s32.totalorder %s17, 0
    %p87 = por %p85, %p86
    %p88 = scmp.ne.s32.totalorder %s74, %s75
    %p89 = scmp.eq.s32.totalorder %s18, 3
    %p90 = por %p88, %p89
    %p92 = scmp.ne.s32.totalorder %s75, %s91
    %p93 = scmp.eq.s32.totalorder %s18, 0
    %p94 = por %p92, %p93
    %s95 = ssub.s32 %s20, %s34
    %p96 = scmp.eq.s32.totalorder %s95, 0
    %s98 = sadd.s32 %s97, 1
    %s99 = scalar_select %p96, %s97, %s98
    %p102 = pneg %p96
    %p103 = scmp.eq.s32.totalorder %s12, 3
    %p104 = por %p102, %p103
    %p105 = scmp.ne.s32.totalorder %s97, %s100
    %p106 = scmp.eq.s32.totalorder %s12, 0
    %p107 = por %p105, %p106
    %p108 = scmp.ne.s32.totalorder %s97, %s100
    %p109 = scmp.eq.s32.totalorder %s17, 3
    %p110 = por %p108, %p109
    %p111 = scmp.ne.s32.totalorder %s100, %s101
    %p112 = scmp.eq.s32.totalorder %s17, 0
    %p113 = por %p111, %p112
    %p114 = scmp.ne.s32.totalorder %s100, %s101
    %p115 = scmp.eq.s32.totalorder %s18, 3
    %p116 = por %p114, %p115
    %p118 = scmp.ne.s32.totalorder %s101, %s117
    %p119 = scmp.eq.s32.totalorder %s18, 0
    %p120 = por %p118, %p119
    %s121 = sadd.s32 %s19, %s21
    %s122 = sadd.s32 %s38, %s30
    %s123 = ssub.s32 %s20, %s34
    %s124 = ssub.s32 %s121, %s122
    %s125 = sor.u32 %s123, %s124
    %p126 = scmp.eq.s32.totalorder %s125, 0
    %s128 = sadd.s32 %s127, 1
    %s129 = scalar_select %p126, %s127, %s128
    %p132 = pneg %p126
    %p133 = scmp.eq.s32.totalorder %s12, 3
    %p134 = por %p132, %p133
    %p135 = scmp.ne.s32.totalorder %s127, %s130
    %p136 = scmp.eq.s32.totalorder %s12, 0
    %p137 = por %p135, %p136
    %p138 = scmp.ne.s32.totalorder %s127, %s130
    %p139 = scmp.eq.s32.totalorder %s17, 3
    %p140 = por %p138, %p139
    %p141 = scmp.ne.s32.totalorder %s130, %s131
    %p142 = scmp.eq.s32.totalorder %s17, 0
    %p143 = por %p141, %p142
    %p144 = scmp.ne.s32.totalorder %s130, %s131
    %p145 = scmp.eq.s32.totalorder %s18, 3
    %p146 = por %p144, %p145
    %p148 = scmp.ne.s32.totalorder %s131, %s147
    %p149 = scmp.eq.s32.totalorder %s18, 0
    %p150 = por %p148, %p149
    %s151 = sadd.s32 %s19, %s21
    %s152 = sadd.s32 %s38, %s30
    %s153 = ssub.s32 %s151, %s152
    %p154 = scmp.eq.s32.totalorder %s153, 0
    %s156 = sadd.s32 %s155, 1
    %s157 = scalar_select %p154, %s155, %s156
    %p160 = pneg %p154
    %p161 = scmp.eq.s32.totalorder %s12, 3
    %p162 = por %p160, %p161
    %p163 = scmp.ne.s32.totalorder %s155, %s158
    %p164 = scmp.eq.s32.totalorder %s12, 0
    %p165 = por %p163, %p164
    %p166 = scmp.ne.s32.totalorder %s155, %s158
    %p167 = scmp.eq.s32.totalorder %s17, 3
    %p168 = por %p166, %p167
    %p169 = scmp.ne.s32.totalorder %s158, %s159
    %p170 = scmp.eq.s32.totalorder %s17, 0
    %p171 = por %p169, %p170
    %p172 = scmp.ne.s32.totalorder %s158, %s159
    %p173 = scmp.eq.s32.totalorder %s18, 3
    %p174 = por %p172, %p173
    %p176 = scmp.ne.s32.totalorder %s159, %s175
    %p177 = scmp.eq.s32.totalorder %s18, 0
    %p178 = por %p176, %p177
    %s180 = sadd.s32 %s179, 1
    %p183 = scmp.eq.s32.totalorder %s12, 3
    %p184 = scmp.ne.s32.totalorder %s179, %s181
    %p185 = scmp.eq.s32.totalorder %s12, 0
    %p186 = por %p184, %p185
    %p187 = scmp.ne.s32.totalorder %s179, %s181
    %p188 = scmp.eq.s32.totalorder %s17, 3
    %p189 = por %p187, %p188
    %p190 = scmp.ne.s32.totalorder %s181, %s182
    %p191 = scmp.eq.s32.totalorder %s17, 0
    %p192 = por %p190, %p191
    %p193 = scmp.ne.s32.totalorder %s181, %s182
    %p194 = scmp.eq.s32.totalorder %s18, 3
    %p195 = por %p193, %p194
    %p197 = scmp.ne.s32.totalorder %s182, %s196
    %p198 = scmp.eq.s32.totalorder %s18, 0
    %p199 = por %p197, %p198
    %s200 = smul.u32 %s19, 2
    %s201 = sadd.s32 %s200, %s20
    %s202 = smul.u32 %s38, 2
    %s203 = sadd.s32 %s202, %s34
    %s204 = ssub.s32 %s201, %s203
    %p205 = scmp.eq.s32.totalorder %s204, 0
    %s207 = sadd.s32 %s206, 1
    %s208 = scalar_select %p205, %s206, %s207
    %p211 = pneg %p205
    %p212 = scmp.eq.s32.totalorder %s12, 3
    %p213 = por %p211, %p212
    %p214 = scmp.ne.s32.totalorder %s206, %s209
    %p215 = scmp.eq.s32.totalorder %s12, 0
    %p216 = por %p214, %p215
    %p217 = scmp.ne.s32.totalorder %s206, %s209
    %p218 = scmp.eq.s32.totalorder %s17, 3
    %p219 = por %p217, %p218
    %p220 = scmp.ne.s32.totalorder %s209, %s210
    %p221 = scmp.eq.s32.totalorder %s17, 0
    %p222 = por %p220, %p221
    %p223 = scmp.ne.s32.totalorder %s209, %s210
    %p224 = scmp.eq.s32.totalorder %s18, 3
    %p225 = por %p223, %p224
    %p227 = scmp.ne.s32.totalorder %s210, %s226
    %p228 = scmp.eq.s32.totalorder %s18, 0
    %p229 = por %p227, %p228
    %p230 = scmp.le.s32.totalorder 1, %s12
    %p231 = scmp.lt.s32.totalorder %s12, 5
    %p232 = pnand %p230, %p231
    %p233 = pneg %p232
    // Predicated region
    $region9: #{tpu_custom_call.1} parent=5 // pred_check
      _
    $region10: #{tpu_custom_call.1} parent=5 // pred_check_branch
      %235 = sbr.rel (%p232) target = $region12
    $region11: #{tpu_custom_call.1} parent=5 // pred_region
      %s236 = ssub.s32 %s12, 1
      // Predicated region
      $region13: #{tpu_custom_call.1} parent=11 // pred_check
        %p237 = pneg %p192
      $region14: #{tpu_custom_call.1} parent=11 // pred_check_branch
        %239 = sbr.rel (%p237) target = $region16
      $region15: #{tpu_custom_call.1} parent=11 // pred_region
        _
      $region16: #{tpu_custom_call.1} parent=11 // pred_fallthru
        _
    $region12: #{tpu_custom_call.1} parent=5 // pred_fallthru
      _
    %p240 = scmp.lt.s32.totalorder %s12, 4
    // Predicated region
    $region17: #{tpu_custom_call.1} parent=5 // pred_check
      %p241 = pneg %p240
    $region18: #{tpu_custom_call.1} parent=5 // pred_check_branch
      %243 = sbr.rel (%p241) target = $region20
    $region19: #{tpu_custom_call.1} parent=5 // pred_region
      // Predicated region
      $region21: #{tpu_custom_call.1} parent=19 // pred_check
        %p244 = pneg %p55
      $region22: #{tpu_custom_call.1} parent=19 // pred_check_branch
        %246 = sbr.rel (%p244) target = $region24
      $region23: #{tpu_custom_call.1} parent=19 // pred_region
        %s247 = sadd.s32 %s19, %s21
        %p248 = scmp.lt.s32.totalorder %s20, 1
        %s249 = scalar_select %p248, %s20, 1
        %p250 = scmp.lt.s32.totalorder %s247, 1
        %s251 = scalar_select %p250, %s247, 1
        %s252 = smul.addr %s249, 2
        %s253 = sadd.s32 %s251, %s252
        %s254 = smul.addr %s253, 4
        %s255 = scalar_lea.vmem %s0, %s254
        %s256 = sadd.s32 %s19, %s21
      $region24: #{tpu_custom_call.1} parent=19 // pred_fallthru
        _
      // Predicated region
      $region25: #{tpu_custom_call.1} parent=19 // pred_check
        %p257 = pneg %p81
      $region26: #{tpu_custom_call.1} parent=19 // pred_check_branch
        %259 = sbr.rel (%p257) target = $region28
      $region27: #{tpu_custom_call.1} parent=19 // pred_region
        %p260 = scmp.lt.s32.totalorder %s20, 1
        %s261 = scalar_select %p260, %s20, 1
        %s262 = smul.addr %s261, 2
        %s263 = smul.addr %s262, 8
        %s264 = scalar_lea.vmem %s1, %s263
      $region28: #{tpu_custom_call.1} parent=19 // pred_fallthru
        _
      // Predicated region
      $region29: #{tpu_custom_call.1} parent=19 // pred_check
        %p265 = pneg %p107
      $region30: #{tpu_custom_call.1} parent=19 // pred_check_branch
        %267 = sbr.rel (%p265) target = $region32
      $region31: #{tpu_custom_call.1} parent=19 // pred_region
        %p268 = scmp.lt.s32.totalorder %s20, 1
        %s269 = scalar_select %p268, %s20, 1
        %s270 = smul.addr %s269, 2
        %s271 = smul.addr %s270, 8
        %s272 = scalar_lea.vmem %s2, %s271
      $region32: #{tpu_custom_call.1} parent=19 // pred_fallthru
        _
      // Predicated region
      $region33: #{tpu_custom_call.1} parent=19 // pred_check
        %p273 = pneg %p137
      $region34: #{tpu_custom_call.1} parent=19 // pred_check_branch
        %275 = sbr.rel (%p273) target = $region36
      $region35: #{tpu_custom_call.1} parent=19 // pred_region
        %s276 = sadd.s32 %s19, %s21
        %p277 = scmp.lt.s32.totalorder %s20, 1
        %s278 = scalar_select %p277, %s20, 1
        %p279 = scmp.lt.s32.totalorder %s276, 1
        %s280 = scalar_select %p279, %s276, 1
        %s281 = smul.addr %s278, 2
        %s282 = sadd.s32 %s280, %s281
        %s283 = scalar_lea.vmem %s3, %s282
        %s284 = sadd.s32 %s19, %s21
      $region36: #{tpu_custom_call.1} parent=19 // pred_fallthru
        _
      // Predicated region
      $region37: #{tpu_custom_call.1} parent=19 // pred_check
        %p285 = pneg %p165
      $region38: #{tpu_custom_call.1} parent=19 // pred_check_branch
        %287 = sbr.rel (%p285) target = $region40
      $region39: #{tpu_custom_call.1} parent=19 // pred_region
        %s288 = sadd.s32 %s19, %s21
        %p289 = scmp.lt.s32.totalorder %s288, 1
        %s290 = scalar_select %p289, %s288, 1
        %s291 = scalar_lea.vmem %s4, %s290
        %s292 = sadd.s32 %s19, %s21
      $region40: #{tpu_custom_call.1} parent=19 // pred_fallthru
        _
    $region20: #{tpu_custom_call.1} parent=5 // pred_fallthru
      _
    %p293 = scmp.le.s32.totalorder 1, %s12
    %p294 = scmp.lt.s32.totalorder %s12, 5
    %p295 = pnand %p293, %p294
    %p296 = pneg %p295
    // Predicated region
    $region41: #{tpu_custom_call.1} parent=5 // pred_check
      _
    $region42: #{tpu_custom_call.1} parent=5 // pred_check_branch
      %298 = sbr.rel (%p295) target = $region44
    $region43: #{tpu_custom_call.1} parent=5 // pred_region
      %s299 = ssub.s32 %s12, 1
      %s300 = sadd.s32 %s22, %s24
      %p301 = scmp.lt.s32.totalorder %s23, 1
      %s302 = scalar_select %p301, %s23, 1
      %p303 = scmp.lt.s32.totalorder %s300, 1
      %s304 = scalar_select %p303, %s300, 1
      %s305 = smul.addr %s302, 2
      %s306 = sadd.s32 %s304, %s305
      %s307 = smul.addr %s306, 4
      %s308 = scalar_lea.vmem %s0, %s307
      %p309 = pneg %p61
      %p310 = pneg %p58
      %p311 = scmp.lt.s32.totalorder %s23, 1
      %s312 = scalar_select %p311, %s23, 1
      %s313 = smul.addr %s312, 2
      %s314 = smul.addr %s313, 8
      %s315 = scalar_lea.vmem %s1, %s314
      %p316 = pneg %p87
      %p317 = pneg %p84
      %p318 = scmp.lt.s32.totalorder %s23, 1
      %s319 = scalar_select %p318, %s23, 1
      %s320 = smul.addr %s319, 2
      %s321 = smul.addr %s320, 8
      %s322 = scalar_lea.vmem %s2, %s321
      %p323 = pneg %p113
      %p324 = pneg %p110
      %s325 = sadd.s32 %s22, %s24
      %p326 = scmp.lt.s32.totalorder %s23, 1
      %s327 = scalar_select %p326, %s23, 1
      %p328 = scmp.lt.s32.totalorder %s325, 1
      %s329 = scalar_select %p328, %s325, 1
      %s330 = smul.addr %s327, 2
      %s331 = sadd.s32 %s329, %s330
      %s332 = scalar_lea.vmem %s3, %s331
      %p333 = pneg %p143
      %p334 = pneg %p140
      %s335 = sadd.s32 %s22, %s24
      %p336 = scmp.lt.s32.totalorder %s335, 1
      %s337 = scalar_select %p336, %s335, 1
      %s338 = scalar_lea.vmem %s4, %s337
      %p339 = pneg %p171
      %p340 = pneg %p168
      %p341 = pneg %p192
      %p342 = pneg %p189
      %p343 = pneg %p222
      %p344 = pneg %p219
      %s345 = smul.u32 %s22, 2
      %s346 = sadd.s32 %s345, %s23
      %p347 = scmp.lt.s32.totalorder %s346, 3
      %s348 = scalar_select %p347, %s346, 3
      %s349 = scalar_lea.vmem %s6, %s348
      %s350 = sadd.s32 %s22, %s24
      %p351 = scmp.lt.s32.totalorder %s23, 1
      %s352 = scalar_select %p351, %s23, 1
      %p353 = scmp.lt.s32.totalorder %s350, 1
      %s354 = scalar_select %p353, %s350, 1
      %s355 = smul.addr %s352, 2
      %s356 = sadd.s32 %s354, %s355
      %s357 = smul.addr %s356, 4
      %s358 = scalar_lea.vmem %s0, %s357
      %s359 = sadd.s32 %s22, %s24
      %p360 = scmp.lt.s32.totalorder %s23, 1
      %s361 = scalar_select %p360, %s23, 1
      %s362 = smul.addr %s361, 2
      %s363 = smul.addr %s362, 8
      %s364 = scalar_lea.vmem %s1, %s363
      %p365 = scmp.lt.s32.totalorder %s23, 1
      %s366 = scalar_select %p365, %s23, 1
      %s367 = smul.addr %s366, 2
      %s368 = smul.addr %s367, 8
      %s369 = scalar_lea.vmem %s2, %s368
      %s370 = sadd.s32 %s22, %s24
      %p371 = scmp.lt.s32.totalorder %s23, 1
      %s372 = scalar_select %p371, %s23, 1
      %p373 = scmp.lt.s32.totalorder %s370, 1
      %s374 = scalar_select %p373, %s370, 1
      %s375 = smul.addr %s372, 2
      %s376 = sadd.s32 %s374, %s375
      %s377 = scalar_lea.vmem %s3, %s376
      %s378 = sadd.s32 %s22, %s24
      %s379 = sadd.s32 %s22, %s24
      %p380 = scmp.lt.s32.totalorder %s379, 1
      %s381 = scalar_select %p380, %s379, 1
      %s382 = scalar_lea.vmem %s4, %s381
      %s383 = sadd.s32 %s22, %s24
      %s384 = smul.u32 %s22, 2
      %s385 = sadd.s32 %s384, %s23
      %p386 = scmp.lt.s32.totalorder %s385, 3
      %s387 = scalar_select %p386, %s385, 3
      %s388 = scalar_lea.vmem %s6, %s387
      %s389 = smul.u32 %s22, 2
      %s390 = sadd.s32 %s389, %s23
      %p391 = scmp.eq.s32.totalorder %s24, 0
      // Predicated region
      $region45: #{tpu_custom_call.1} parent=43 // pred_check
        %p392 = pneg %p391
      $region46: #{tpu_custom_call.1} parent=43 // pred_check_branch
        %394 = sbr.rel (%p392) target = $region48
      $region47: #{tpu_custom_call.1} parent=43 // pred_region
        %395 = vst [vmem:[#allocation2] sm:$0x1] 0.0
      $region48: #{tpu_custom_call.1} parent=43 // pred_fallthru
        _
      %v396 = vld [vmem:[%s364] sm:$0xff]
      %v397 = vld [vmem:[%s364 + $0x8] sm:$0xff]
      %v398 = vld [vmem:[%s358] sm:$0xf]
      %v399 = vld [vmem:[%s369] sm:$0xff]
      %v400 = vld [vmem:[%s369 + $0x8] sm:$0xff]
      %402 = vset.pattern.permute.xlu0 0
      %403 = vperm.xlu0 %402, %v399
      %v404 = vpop.permute.xlu0 %403
      %407 = vset.pattern.permute.xlu0 0
      %408 = vperm.xlu0 %407, %v400
      %v409 = vpop.permute.xlu0 %408
      %vm411 = vcmask 31744
      %v413 = vsel %vm411, %v396, 0
      %v416 = vsel %vm411, %v397, 0
      %vm418 = vcmask 1043456
      %v420 = vsel %vm418, %v398, 0
      %422 = vmatprep.subr.mxu0 0.0
      %423 = vmatpush1.msra.mxu0 %v420
      %424 = vmatprep.subr.mxu0 0.0
      %425 = vmatpush1.msra.mxu0 0.0
      %426 = vmatprep.subr.mxu0 0.0
      %427 = vmatpush1.msra.mxu0 0.0
      %428 = vmatprep.subr.mxu0 0.0
      %429 = vmatpush1.msra.mxu0 0.0
      %430 = vmatprep.subr.mxu0 0.0
      %431 = vmatpush1.msra.mxu0 0.0
      %432 = vmatprep.subr.mxu0 0.0
      %433 = vmatpush1.msra.mxu0 0.0
      %434 = vmatprep.subr.mxu0 0.0
      %435 = vmatpush1.msra.mxu0 0.0
      %436 = vmatprep.subr.mxu0 0.0
      %437 = vmatpush1.msra.mxu0 0.0
      %438 = vmatprep.subr.mxu0 0.0
      %439 = vmatpush1.msra.mxu0 0.0
      %440 = vmatprep.subr.mxu0 0.0
      %441 = vmatpush1.msra.mxu0 0.0
      %442 = vmatprep.subr.mxu0 0.0
      %443 = vmatpush1.msra.mxu0 0.0
      %444 = vmatprep.subr.mxu0 0.0
      %445 = vmatpush1.msra.mxu0 0.0
      %446 = vmatprep.subr.mxu0 0.0
      %447 = vmatpush1.msra.mxu0 0.0
      %448 = vmatprep.subr.mxu0 0.0
      %449 = vmatpush1.msra.mxu0 0.0
      %450 = vmatprep.subr.mxu0 0.0
      %451 = vmatpush1.msra.mxu0 0.0
      %452 = vmatprep.subr.mxu0 0.0
      %453 = vmatpush1.msra.mxu0 0.0
      %454 = vmatprep.subr.mxu0 0.0
      %455 = vmatpush1.msra.mxu0 0.0
      %456 = vmatprep.subr.mxu0 0.0
      %457 = vmatpush1.msra.mxu0 0.0
      %458 = vmatprep.subr.mxu0 0.0
      %459 = vmatpush1.msra.mxu0 0.0
      %460 = vmatprep.subr.mxu0 0.0
      %461 = vmatpush1.msra.mxu0 0.0
      %462 = vmatprep.subr.mxu0 0.0
      %463 = vmatpush1.msra.mxu0 0.0
      %464 = vmatprep.subr.mxu0 0.0
      %465 = vmatpush1.msra.mxu0 0.0
      %466 = vmatprep.subr.mxu0 0.0
      %467 = vmatpush1.msra.mxu0 0.0
      %468 = vmatprep.subr.mxu0 0.0
      %469 = vmatpush1.msra.mxu0 0.0
      %470 = vmatprep.subr.mxu0 0.0
      %471 = vmatpush1.msra.mxu0 0.0
      %472 = vmatprep.subr.mxu0 0.0
      %473 = vmatpush1.msra.mxu0 0.0
      %474 = vmatprep.subr.mxu0 0.0
      %475 = vmatpush1.msra.mxu0 0.0
      %476 = vmatprep.subr.mxu0 0.0
      %477 = vmatpush1.msra.mxu0 0.0
      %478 = vmatprep.subr.mxu0 0.0
      %479 = vmatpush1.msra.mxu0 0.0
      %480 = vmatprep.subr.mxu0 0.0
      %481 = vmatpush1.msra.mxu0 0.0
      %482 = vmatprep.subr.mxu0 0.0
      %483 = vmatpush1.msra.mxu0 0.0
      %484 = vmatprep.subr.mxu0 0.0
      %485 = vmatpush1.msra.mxu0 0.0
      %486 = vmatprep.mubr.f32.mxu0 0.0
      %487 = vmatmul.mubr.f32.gmra.mrb[0].mxu0 %v413
      %v488 = vpop.f32.mrb[0].mxu0
      %v489 = vadd.f32 %v404, %v488
      %v490 = vpop.f32.mrb[0].mxu0
      %491 = vmatprep.mubr.f32.mxu0 0.0
      %492 = vmatmul.mubr.f32.gmra.mrb[0].mxu0 %v416
      %v493 = vpop.f32.mrb[0].mxu0
      %v494 = vadd.f32 %v409, %v493
      %v495 = vpop.f32.mrb[0].mxu0
      %496 = vdwg.mxu0
      %v497 = vld [vmem:[%s377] sm:$0x1]
      %v499 = vlaneseq
      %v500 = vshrl.u32 %v499, 7
      %v501 = vsub.s32 0, %v500
      %v502 = vrot.slane %v497, %v501
      %v504 = vmul.f32 %v489, %v502
      %v505 = vmul.f32 %v494, %v502
      %v506 = vmul.f32 %v504, 1.442695
      %v507 = vpow.pop %v506
      %v508 = vmul.f32 %v505, 1.442695
      %v509 = vpow.pop %v508
      %v510 = vld [vmem:[%s382] sm:$0x1]
      %v511 = vld [vmem:[%s5] sm:$0xff]
      %v512 = vld [vmem:[%s5 + $0x8] sm:$0xff]
      %v513 = vlaneseq
      %v514 = vshrl.u32 %v513, 7
      %v515 = vsub.s32 0, %v514
      %v516 = vrot.slane %v510, %v515
      %517 = vset.pattern.permute.xlu0 0
      %518 = vperm.xlu0 %517, %v511
      %v519 = vpop.permute.xlu0 %518
      %520 = vset.pattern.permute.xlu0 0
      %521 = vperm.xlu0 %520, %v512
      %v522 = vpop.permute.xlu0 %521
      %vm523 = vcmp.ne.s32.totalorder %v516, %v519
      %vm524 = vcmp.ne.s32.totalorder %v516, %v522
      %v525 = vsel %vm523, %v507, 0.0
      %v526 = vsel %vm524, %v509, 0.0
      %v527 = vld [vmem:[#allocation2] sm:$0x1]
      %v528 = vadd.f32 %v525, %v526
      %v529 = vrot.slane %v528, 4
      %v530 = vadd.f32 %v528, %v529
      %v531 = vrot.slane %v530, 2
      %v532 = vadd.f32 %v530, %v531
      %v533 = vrot.slane %v532, 1
      %v534 = vadd.f32 %v532, %v533
      %v535 = vadd.f32 %v527, %v534
      %536 = vst [vmem:[#allocation2] sm:$0x1] %v535
      // Predicated region
      $region49: #{tpu_custom_call.1} parent=43 // pred_check
        %p537 = pneg %p391
      $region50: #{tpu_custom_call.1} parent=43 // pred_check_branch
        %539 = sbr.rel (%p537) target = $region52
      $region51: #{tpu_custom_call.1} parent=43 // pred_region
        %v540 = vld [vmem:[#allocation2] sm:$0x1]
        %vm541 = vcmask 1040384
        %v542 = vsel %vm541, %v540, 0.0
        %543 = vadd.xlane.f32.xlu0 %v542
        %v544 = vpop.xlane.xlu0 %543
        %v545 = vrot.slane %v544, 4
        %v546 = vadd.f32 %v544, %v545
        %v547 = vrot.slane %v546, 2
        %v548 = vadd.f32 %v546, %v547
        %v549 = vrot.slane %v548, 1
        %v550 = vadd.f32 %v548, %v549
        %s551 = vtos %v550
        %v552 = vstv %s551
        %vm553 = vcmask 0
        %554 = vst.msk [vmem:[%s388] sm:$0x1] %vm553, %v552
      $region52: #{tpu_custom_call.1} parent=43 // pred_fallthru
        _
      %s555 = smul.u32 %s22, 2
      %s556 = sadd.s32 %s555, %s23
      %p557 = scmp.lt.s32.totalorder %s556, 3
      %s558 = scalar_select %p557, %s556, 3
      %s559 = scalar_lea.vmem %s6, %s558
      // Predicated region
      $region53: #{tpu_custom_call.1} parent=43 // pred_check
        %p560 = pneg %p219
      $region54: #{tpu_custom_call.1} parent=43 // pred_check_branch
        %562 = sbr.rel (%p560) target = $region56
      $region55: #{tpu_custom_call.1} parent=43 // pred_region
        %s563 = smul.u32 %s22, 2
        %s564 = sadd.s32 %s563, %s23
      $region56: #{tpu_custom_call.1} parent=43 // pred_fallthru
        _
    $region44: #{tpu_custom_call.1} parent=5 // pred_fallthru
      _
    %p565 = scmp.le.s32.totalorder 2, %s12
    // Predicated region
    $region57: #{tpu_custom_call.1} parent=5 // pred_check
      %p566 = pneg %p565
    $region58: #{tpu_custom_call.1} parent=5 // pred_check_branch
      %568 = sbr.rel (%p566) target = $region60
    $region59: #{tpu_custom_call.1} parent=5 // pred_region
      %s569 = ssub.s32 %s12, 2
      // Predicated region
      $region61: #{tpu_custom_call.1} parent=59 // pred_check
        %p570 = pneg %p225
      $region62: #{tpu_custom_call.1} parent=59 // pred_check_branch
        %572 = sbr.rel (%p570) target = $region64
      $region63: #{tpu_custom_call.1} parent=59 // pred_region
        %s573 = smul.u32 %s25, 2
        %s574 = sadd.s32 %s573, %s26
        %p575 = scmp.lt.s32.totalorder %s574, 3
        %s576 = scalar_select %p575, %s574, 3
        %s577 = scalar_lea.vmem %s6, %s576
      $region64: #{tpu_custom_call.1} parent=59 // pred_fallthru
        _
    $region60: #{tpu_custom_call.1} parent=5 // pred_fallthru
      _
  $region6: #{tpu_custom_call.1} parent=0 // loop_footer
    %s16 = sadd.s32 1, %s12
  $region7: #{tpu_custom_call.1} parent=0 // loop_footer_branch
    %11 = sbr.rel target = $region3
  $region8: #{tpu_custom_call.1} parent=0 // loop_exit
    _

</llo_original>
